<compile_context>
chip_gen: v7x
topology: tpu7x:2x2x1
jax: 0.10.0
libtpu: 0.0.40
codegen_flags: <defaults>
</compile_context>

<pallas_src>
import jax
import jax.numpy as jnp
import numpy as np
from jax.experimental import pallas as pl
from jax.experimental.pallas import tpu as pltpu


# ----------------------------- Pallas kernel -------------------------------

def _make_pooling_kernel(pool_size, L_pad):
    pad = pool_size // 2
    offsets = tuple(range(-pad, pool_size - pad))   # e.g. (-1, 0, 1) for k=3

    def pooling_kernel(x_ref, w_ref, o_ref):
        # x_ref: (R_block, L_pad) row tile; w_ref: (pool_size, L_pad) weights
        # (weights already contain 1/valid_count and zero out padded /
        #  out-of-range taps, so no masks or divides are needed here).
        x = x_ref[...]
        xf = x.astype(jnp.float32)
        w = w_ref[...]                               # f32

        s = xf * w[pad:pad + 1, :]                   # center tap (o == 0)
        for j, o in enumerate(offsets):              # unrolled at trace time
            if o == 0:
                continue
            # shifted[i] = x[(i + o) mod L_pad]  (circular lane rotation, XLU)
            shifted = pltpu.roll(xf, shift=(-o) % L_pad, axis=1)
            s = s + shifted * w[j:j + 1, :]

        # AvgPool1d(count_include_pad=False) minus identity, fused.
        o_ref[...] = (s - xf).astype(o_ref.dtype)

    return pooling_kernel


# ------------------------------- wrapper ------------------------------------

def pooling_forward(x, pool_size=3, target_block_bytes=2 * 1024 * 1024):
    # Stride-1 AvgPool1d with padding=k//2 only preserves length for odd k
    # (which is what PoolFormer uses; default pool_size=3).
    assert pool_size % 2 == 1
    N, C, L = x.shape
    pad = pool_size // 2
    assert pad < L, "pool half-window must be smaller than sequence length"

    # ---- shapes: lane-dense L, row-tiled (N*C) ----
    L_pad = ((L + 127) // 128) * 128
    rows = N * C
    itemsize = jnp.dtype(x.dtype).itemsize
    row_mult = 8 if itemsize >= 4 else 16            # f32 / bf16 sublane packing

    rb = target_block_bytes // (L_pad * itemsize)    # ~2 MiB per block
    rb = max(row_mult, (rb // row_mult) * row_mult)
    rows_min = ((rows + row_mult - 1) // row_mult) * row_mult
    rb = min(rb, rows_min)
    rows_pad = ((rows + rb - 1) // rb) * rb
    grid = (rows_pad // rb,)

    x2 = x.reshape(rows, L)
    x2 = jnp.pad(x2, ((0, rows_pad - rows), (0, L_pad - L)))

    # ---- host-precomputed per-offset weights (count_include_pad=False) ----
    # w[j, i] = 1/valid_count(i) if tap (i + offset_j) lies inside the true L,
    # else 0.  Built against the TRUE L; padded lanes get weight 0.
    idx = np.arange(L)
    offs = np.arange(-pad, pool_size - pad)
    valid = (idx[None, :] + offs[:, None] >= 0) & (idx[None, :] + offs[:, None] < L)
    count = valid.sum(axis=0).astype(np.float32)
    w_np = np.zeros((pool_size, L_pad), np.float32)
    w_np[:, :L] = valid.astype(np.float32) / count[None, :]
    w = jnp.asarray(w_np)

    kernel = _make_pooling_kernel(pool_size, L_pad)

    out2 = pl.pallas_call(
        kernel,
        out_shape=jax.ShapeDtypeStruct((rows_pad, L_pad), x.dtype),
        grid_spec=pltpu.PrefetchScalarGridSpec(
            num_scalar_prefetch=0,
            grid=grid,
            in_specs=[
                pl.BlockSpec((rb, L_pad), lambda r: (r, 0)),          # x rows
                pl.BlockSpec((pool_size, L_pad), lambda r: (0, 0)),   # weights
            ],
            out_specs=pl.BlockSpec((rb, L_pad), lambda r: (r, 0)),
        ),
        compiler_params=pltpu.CompilerParams(
            dimension_semantics=("parallel",)),
    )(x2, w)

    return out2[:rows, :L].reshape(N, C, L)


# --------------------------- pure-JAX reference ------------------------------

def pooling_reference(x, pool_size=3):
    pad = pool_size // 2
    N, C, L = x.shape
    xp = jnp.pad(x, ((0, 0), (0, 0), (pad, pad)))
    op = jnp.pad(jnp.ones((1, 1, L), x.dtype), ((0, 0), (0, 0), (pad, pad)))
    s = sum(xp[:, :, i:i + L] for i in range(pool_size))
    c = sum(op[:, :, i:i + L] for i in range(pool_size))
    return s / c - x


# ---------------------------------- main ------------------------------------

if __name__ == "__main__":
    POOL_SIZE = 3
    key = jax.random.PRNGKey(0)

    # Case 1: lane-aligned sequence length.
    N, C, L = 2, 8, 128
    x = jax.random.normal(key, (N, C, L), jnp.float32)
    out = jax.block_until_ready(pooling_forward(x, pool_size=POOL_SIZE))
    ref = jax.block_until_ready(pooling_reference(x, pool_size=POOL_SIZE))
    assert out.shape == (N, C, L)
    np.testing.assert_allclose(np.asarray(out), np.asarray(ref),
                               rtol=1e-5, atol=1e-6)

    # Case 2: PoolFormer-style non-128-multiple L (exercises the lane padding).
    N2, C2, L2 = 2, 8, 196
    x2 = jax.random.normal(jax.random.PRNGKey(1), (N2, C2, L2), jnp.float32)
    out2 = jax.block_until_ready(pooling_forward(x2, pool_size=POOL_SIZE))
    ref2 = jax.block_until_ready(pooling_reference(x2, pool_size=POOL_SIZE))
    np.testing.assert_allclose(np.asarray(out2), np.asarray(ref2),
                               rtol=1e-5, atol=1e-6)

    print("KERNEL_OK")
</pallas_src>

<mosaic_0001>
module attributes {stable_mosaic.version = 11 : i64} {
  func.func @pooling_kernel(%arg0: i32, %arg1: memref<16x128xf32, #tpu.memory_space<vmem>>, %arg2: memref<3x128xf32, #tpu.memory_space<vmem>>, %arg3: memref<16x128xf32, #tpu.memory_space<vmem>>) attributes {dimension_semantics = [#tpu.dimension_semantics<parallel>], iteration_bounds = array<i64: 1>, scalar_prefetch = 0 : i64, scratch_operands = 0 : i64, tpu.core_type = #tpu.core_type<tc>, window_params = [{transform_indices = @transform_0, window_bounds = array<i64: 16, 128>}, {pipeline_mode = #tpu.pipeline_mode<synchronous>, transform_indices = @transform_1, window_bounds = array<i64: 3, 128>}, {transform_indices = @transform_2, window_bounds = array<i64: 16, 128>}]} {
    %c0 = arith.constant 0 : index
    %c0_0 = arith.constant 0 : index
    %0 = vector.load %arg1[%c0, %c0_0] : memref<16x128xf32, #tpu.memory_space<vmem>>, vector<16x128xf32>
    %c0_1 = arith.constant 0 : index
    %c0_2 = arith.constant 0 : index
    %1 = vector.load %arg2[%c0_1, %c0_2] : memref<3x128xf32, #tpu.memory_space<vmem>>, vector<3x128xf32>
    %2 = vector.extract_strided_slice %1 {offsets = [1, 0], sizes = [1, 128], strides = [1, 1]} : vector<3x128xf32> to vector<1x128xf32>
    %3 = vector.broadcast %2 : vector<1x128xf32> to vector<16x128xf32>
    %4 = arith.mulf %0, %3 : vector<16x128xf32>
    %c1_i32 = arith.constant 1 : i32
    %5 = tpu.dynamic_rotate %0 by %c1_i32 dim 1 : vector<16x128xf32>, i32 -> vector<16x128xf32>
    %6 = vector.extract_strided_slice %1 {offsets = [0, 0], sizes = [1, 128], strides = [1, 1]} : vector<3x128xf32> to vector<1x128xf32>
    %7 = vector.broadcast %6 : vector<1x128xf32> to vector<16x128xf32>
    %8 = arith.mulf %5, %7 : vector<16x128xf32>
    %9 = arith.addf %4, %8 : vector<16x128xf32>
    %c127_i32 = arith.constant 127 : i32
    %10 = tpu.dynamic_rotate %0 by %c127_i32 dim 1 : vector<16x128xf32>, i32 -> vector<16x128xf32>
    %11 = vector.extract_strided_slice %1 {offsets = [2, 0], sizes = [1, 128], strides = [1, 1]} : vector<3x128xf32> to vector<1x128xf32>
    %12 = vector.broadcast %11 : vector<1x128xf32> to vector<16x128xf32>
    %13 = arith.mulf %10, %12 : vector<16x128xf32>
    %14 = arith.addf %9, %13 : vector<16x128xf32>
    %15 = arith.subf %14, %0 : vector<16x128xf32>
    %c0_3 = arith.constant 0 : index
    %c0_4 = arith.constant 0 : index
    %16 = vector.load %arg3[%c0_3, %c0_4] : memref<16x128xf32, #tpu.memory_space<vmem>>, vector<16x128xf32>
    tpu.vector_store %arg3[%c0_3, %c0_4], %15 {strides = array<i32>} : memref<16x128xf32, #tpu.memory_space<vmem>>, vector<16x128xf32>,
    return
  }
  func.func @transform_0(%arg0: i32) -> (i32, i32) {
    %c0_i32 = arith.constant 0 : i32
    %c0_i32_0 = arith.constant 0 : i32
    return %arg0, %c0_i32 : i32, i32
  }
  func.func @transform_1(%arg0: i32) -> (i32, i32) {
    %c0_i32 = arith.constant 0 : i32
    %c0_i32_0 = arith.constant 0 : i32
    %c0_i32_1 = arith.constant 0 : i32
    return %c0_i32, %c0_i32_0 : i32, i32
  }
  func.func @transform_2(%arg0: i32) -> (i32, i32) {
    %c0_i32 = arith.constant 0 : i32
    %c0_i32_0 = arith.constant 0 : i32
    return %arg0, %c0_i32 : i32, i32
  }
}

</mosaic_0001>

<llo_original>
// kernel: tpu_custom_call.1
$region0: #{tpu_custom_call.1}
  #allocation0 [shape = 'u32[]', space=smem, size = 0x4, offset = 0x4, fixed_abs, tag = 'smem constant byte address 0x4 - core index']
  #allocation1 [shape = 'u32[144,128]{1,0:T(1,128)}', space=vmem, size = 0x12000, scoped, tag = 'internal scratch']
  %s0 = inlined_call_operand.hbm [shape: f32[16,128], index: 0, kind: input, shape index: {}]
  %s1 = inlined_call_operand.hbm [shape: f32[3,128], index: 1, kind: input, shape index: {}]
  %s2 = inlined_call_operand.hbm [shape: f32[16,128], index: 2, kind: output, shape index: {}]
  %s3 = sld [smem:[#allocation0]]
  $region26: #{tpu_custom_call.1} parent=0
    _
  %s5 = ssub.s32 1, %s3
  %s6 = scalar_select 0, %s5, %s3
  $region1: #{tpu_custom_call.1} parent=0
    #allocation2 [shape = 'u8[8192]{0}', space=vmem, size = 0x2000, scoped, tag = 'input window, operand 0, single buffered']
    #allocation3 [shape = 's32[1]{0}', space=sflag, size = 0x4, scoped, tag = 'scoped memory for tpu_custom_call.1']
    #allocation4 [shape = 's32[1]{0}', space=sflag, size = 0x4, scoped, tag = 'scoped memory for tpu_custom_call.1']
    #allocation5 [shape = 'u8[2048]{0}', space=vmem, size = 0x800, scoped, tag = 'input window, operand 1, single buffered']
    #allocation6 [shape = 's32[1]{0}', space=sflag, size = 0x4, scoped, tag = 'scoped memory for tpu_custom_call.1']
    #allocation7 [shape = 'u8[8192]{0}', space=vmem, size = 0x2000, scoped, tag = 'output window, operand 0, single buffered']
    %7 = vsyncpa [#allocation3], 0
    %8 = vsyncpa [#allocation6], 0
    %9 = vsyncpa [#allocation4], 0
    // Predicated region
    $region2: #{tpu_custom_call.1} parent=1 // pred_check
      _
    $region3: #{tpu_custom_call.1} parent=1 // pred_check_branch
      %11 = sbr.rel (0) target = $region5
    $region4: #{tpu_custom_call.1} parent=1 // pred_region
      %s13 = ssub.s32 256, 256
      %14 = vsyncadd [#allocation3], %s13
      %s15 = sshll.u32 [#allocation2], 4
      %s16 = int_to_ptr.vmem [resolvable:$true] %s15
      %21 = dma.hbm_to_vmem [thread:$0]  %s0, 256, %s16, [#allocation3], 128, 128, 8
    $region5: #{tpu_custom_call.1} parent=1 // pred_fallthru
      _
    // Predicated region
    $region6: #{tpu_custom_call.1} parent=1 // pred_check
      _
    $region7: #{tpu_custom_call.1} parent=1 // pred_check_branch
      %23 = sbr.rel (0) target = $region9
    $region8: #{tpu_custom_call.1} parent=1 // pred_region
      %s25 = ssub.s32 64, 64
      %26 = vsyncadd [#allocation6], %s25
      %s28 = sshll.u32 [#allocation5], 4
      %s29 = int_to_ptr.vmem [resolvable:$true] %s28
      %31 = dma.hbm_to_vmem [thread:$0]  %s1, 64, %s29, [#allocation6]
    $region9: #{tpu_custom_call.1} parent=1 // pred_fallthru
      _
    // Predicated region
    $region10: #{tpu_custom_call.1} parent=1 // pred_check
      _
    $region11: #{tpu_custom_call.1} parent=1 // pred_check_branch
      %33 = sbr.rel (0) target = $region13
    $region12: #{tpu_custom_call.1} parent=1 // pred_region
      %34 = dma.done [#allocation3], 256
    $region13: #{tpu_custom_call.1} parent=1 // pred_fallthru
      _
    // Predicated region
    $region14: #{tpu_custom_call.1} parent=1 // pred_check
      _
    $region15: #{tpu_custom_call.1} parent=1 // pred_check_branch
      %36 = sbr.rel (0) target = $region17
    $region16: #{tpu_custom_call.1} parent=1 // pred_region
      %37 = dma.done [#allocation6], 64
    $region17: #{tpu_custom_call.1} parent=1 // pred_fallthru
      _
    %v38 = vld [vmem:[#allocation2] sm:$0xff]
    %v39 = vld [vmem:[#allocation2 + $0x8] sm:$0xff]
    %v40 = vld [vmem:[#allocation5] sm:$0x7]
    %v41 = vlaneseq
    %v42 = vshrl.u32 %v41, 7
    %v43 = vsub.s32 1, %v42
    %v44 = vrot.slane %v40, %v43
    %v45 = vmul.f32 %v38, %v44
    %v46 = vmul.f32 %v39, %v44
    %47 = vrot.lane.b32.xlu0 %v38, 1
    %v48 = vpop.permute.xlu0 %47
    %49 = vrot.lane.b32.xlu0 %v39, 1
    %v50 = vpop.permute.xlu0 %49
    %v51 = vlaneseq
    %v52 = vshrl.u32 %v51, 7
    %v53 = vsub.s32 0, %v52
    %v54 = vrot.slane %v40, %v53
    %v55 = vmul.f32 %v48, %v54
    %v56 = vmul.f32 %v50, %v54
    %v57 = vadd.f32 %v45, %v55
    %v58 = vadd.f32 %v46, %v56
    %59 = vrot.lane.b32.xlu0 %v38, 127
    %v60 = vpop.permute.xlu0 %59
    %61 = vrot.lane.b32.xlu0 %v39, 127
    %v62 = vpop.permute.xlu0 %61
    %v63 = vlaneseq
    %v64 = vshrl.u32 %v63, 7
    %v65 = vsub.s32 2, %v64
    %v66 = vrot.slane %v40, %v65
    %v67 = vmul.f32 %v60, %v66
    %v68 = vmul.f32 %v62, %v66
    %v69 = vadd.f32 %v57, %v67
    %v70 = vadd.f32 %v58, %v68
    %v71 = vsub.f32 %v69, %v38
    %v72 = vsub.f32 %v70, %v39
    %73 = vst [vmem:[#allocation7] sm:$0xff] %v71
    %74 = vst [vmem:[#allocation7 + $0x8] sm:$0xff] %v72
    // Predicated region
    $region18: #{tpu_custom_call.1} parent=1 // pred_check
      _
    $region19: #{tpu_custom_call.1} parent=1 // pred_check_branch
      %76 = sbr.rel (0) target = $region21
    $region20: #{tpu_custom_call.1} parent=1 // pred_region
      %s78 = ssub.s32 256, 256
      %79 = vsyncadd [#allocation4], %s78
      %s80 = sshll.u32 [#allocation7], 4
      %s81 = int_to_ptr.vmem [resolvable:$true] %s80
      %86 = dma.vmem_to_hbm [thread:$0]  %s81, 256, %s2, [#allocation4], 128, 128, 8
    $region21: #{tpu_custom_call.1} parent=1 // pred_fallthru
      _
    // Predicated region
    $region22: #{tpu_custom_call.1} parent=1 // pred_check
      _
    $region23: #{tpu_custom_call.1} parent=1 // pred_check_branch
      %88 = sbr.rel (0) target = $region25
    $region24: #{tpu_custom_call.1} parent=1 // pred_region
      %89 = dma.done [#allocation4], 256
    $region25: #{tpu_custom_call.1} parent=1 // pred_fallthru
      _
    %90 = vsyncpa [#allocation3], 1
    %91 = vsyncpa [#allocation6], 1
    %92 = vsyncpa [#allocation4], 1

</llo_original>
